<compile_context>
chip_gen: v6e
topology: v6e:2x2x1
jax: 0.10.0
libtpu: 0.0.40
codegen_flags: <defaults>
</compile_context>

<pallas_src>
import jax
import jax.numpy as jnp
from jax.experimental import pallas as pl
from jax.experimental.pallas import tpu as pltpu


# ---------------------------------------------------------------------------
# Kernel: 1x1 conv as (CO, C) x (C, HW_tile) matmul + bias
# ---------------------------------------------------------------------------
def _bbox_head_kernel(x_ref, w_ref, b_ref, o_ref):
    # x_ref: (C, Tw)   w_ref: (CO, C)   b_ref: (CO, 1)   o_ref: (CO, Tw)
    y = jnp.dot(w_ref[...], x_ref[...], preferred_element_type=jnp.float32)
    o_ref[...] = (y + b_ref[...]).astype(o_ref.dtype)


def _bbox_head_conv(x_flat, w, b2d, tile_w):
    """x_flat: (N, C, HWp) f32, w: (CO, C), b2d: (CO, 1) -> (N, CO, HWp)."""
    N, C, HWp = x_flat.shape
    CO = w.shape[0]
    assert HWp % tile_w == 0
    grid = (N, HWp // tile_w)

    flops = int(2 * N * HWp * C * CO)
    bytes_accessed = int(4 * (N * C * HWp + C * CO + CO + N * CO * HWp))

    return pl.pallas_call(
        _bbox_head_kernel,
        out_shape=jax.ShapeDtypeStruct((N, CO, HWp), jnp.float32),
        grid=grid,
        in_specs=[
            # Activation: streamed tile-by-tile over (batch, HW).
            pl.BlockSpec((None, C, tile_w), lambda n, t: (n, 0, t)),
            # Weight / bias: constant block index -> fetched once, VMEM-resident.
            pl.BlockSpec((CO, C), lambda n, t: (0, 0)),
            pl.BlockSpec((CO, 1), lambda n, t: (0, 0)),
        ],
        out_specs=pl.BlockSpec((None, CO, tile_w), lambda n, t: (n, 0, t)),
        compiler_params=pltpu.CompilerParams(
            dimension_semantics=("parallel", "parallel")),
        cost_estimate=pl.CostEstimate(
            flops=flops, transcendentals=0, bytes_accessed=bytes_accessed),
    )(x_flat, w, b2d)


# ---------------------------------------------------------------------------
# Module wrapper: matches BboxHead.forward semantics
# ---------------------------------------------------------------------------
def bbox_head_forward(x_nchw, params, num_anchors=2):
    N, C, H, W = x_nchw.shape
    CO = num_anchors * 4
    HW = H * W

    # View as (N, C, H*W) -- contiguous reshape, no data movement.
    x_flat = x_nchw.reshape(N, C, HW).astype(jnp.float32)

    # Pick an HW tile (lane-dense, multiple of 128), pad HW if necessary.
    hw128 = ((HW + 127) // 128) * 128
    tile_w = min(1024, hw128)
    HWp = ((HW + tile_w - 1) // tile_w) * tile_w
    if HWp != HW:
        x_flat = jnp.pad(x_flat, ((0, 0), (0, 0), (0, HWp - HW)))

    w = params["w"].astype(jnp.float32)               # (CO, C)
    b2d = params["b"].astype(jnp.float32).reshape(CO, 1)

    y = _bbox_head_conv(x_flat, w, b2d, tile_w)       # (N, CO, HWp)
    y = y[:, :, :HW]                                  # drop HW padding
    # permute(0,2,3,1) + view(N,-1,4) == transpose the tiny CO axis last.
    y = jnp.transpose(y, (0, 2, 1))                   # (N, HW, CO) -- 8 channels only
    return y.reshape(N, HW * num_anchors, 4)


# Pure-JAX reference (mirrors the PyTorch module) for a correctness check.
def bbox_head_reference(x_nchw, params, num_anchors=2):
    N, C, H, W = x_nchw.shape
    y = jnp.einsum("nchw,oc->nohw", x_nchw.astype(jnp.float32),
                   params["w"].astype(jnp.float32))
    y = y + params["b"].astype(jnp.float32)[None, :, None, None]
    y = jnp.transpose(y, (0, 2, 3, 1))
    return y.reshape(N, H * W * num_anchors, 4)


def init_bbox_head_params(key, inchannels=512, num_anchors=2):
    kw, kb = jax.random.split(key)
    CO = num_anchors * 4
    w = (0.05 * jax.random.normal(kw, (CO, inchannels))).astype(jnp.float32)
    b = (0.05 * jax.random.normal(kb, (CO,))).astype(jnp.float32)
    return {"w": w, "b": b}


if __name__ == "__main__":
    key = jax.random.PRNGKey(0)
    k_x, k_p = jax.random.split(key)

    # Module defaults: inchannels=512, num_anchors=2.  Small batch/spatial.
    N, C, H, W = 2, 512, 16, 16
    num_anchors = 2

    x = jax.random.normal(k_x, (N, C, H, W), dtype=jnp.float32)
    params = init_bbox_head_params(k_p, inchannels=C, num_anchors=num_anchors)

    out = jax.block_until_ready(bbox_head_forward(x, params, num_anchors))
    assert out.shape == (N, H * W * num_anchors, 4)

    ref = jax.block_until_ready(bbox_head_reference(x, params, num_anchors))
    assert jnp.allclose(out, ref, atol=1e-4, rtol=1e-4), "mismatch vs reference"

    print("KERNEL_OK")
</pallas_src>

<mosaic_0001>
module attributes {stable_mosaic.version = 11 : i64} {
  func.func @_bbox_head_kernel(%arg0: i32, %arg1: i32, %arg2: memref<1x512x256xf32, #tpu.memory_space<vmem>>, %arg3: memref<8x512xf32, #tpu.memory_space<vmem>>, %arg4: memref<8x1xf32, #tpu.memory_space<vmem>>, %arg5: memref<1x8x256xf32, #tpu.memory_space<vmem>>) attributes {dimension_semantics = [#tpu.dimension_semantics<parallel>, #tpu.dimension_semantics<parallel>], iteration_bounds = array<i64: 2, 1>, scalar_prefetch = 0 : i64, scratch_operands = 0 : i64, tpu.core_type = #tpu.core_type<tc>, window_params = [{transform_indices = @transform_0, window_bounds = array<i64: 1, 512, 256>}, {pipeline_mode = #tpu.pipeline_mode<synchronous>, transform_indices = @transform_1, window_bounds = array<i64: 8, 512>}, {pipeline_mode = #tpu.pipeline_mode<synchronous>, transform_indices = @transform_2, window_bounds = array<i64: 8, 1>}, {transform_indices = @transform_3, window_bounds = array<i64: 1, 8, 256>}]} {
    %c0 = arith.constant 0 : index
    %c0_0 = arith.constant 0 : index
    %0 = vector.load %arg3[%c0, %c0_0] : memref<8x512xf32, #tpu.memory_space<vmem>>, vector<8x512xf32>
    %c0_1 = arith.constant 0 : index
    %c0_2 = arith.constant 0 : index
    %c0_3 = arith.constant 0 : index
    %1 = vector.load %arg2[%c0_1, %c0_2, %c0_3] : memref<1x512x256xf32, #tpu.memory_space<vmem>>, vector<1x512x256xf32>
    %2 = vector.shape_cast %1 : vector<1x512x256xf32> to vector<512x256xf32>
    %cst = arith.constant dense<0.000000e+00> : vector<8x256xf32>
    %3 = tpu.matmul %0, %2, %cst {dimension_numbers = #tpu.dot_dimension_numbers<[1], [0], [0], [1], [0, 0, 1, 1], [], []>} : vector<8x512xf32>, vector<512x256xf32>, vector<8x256xf32> -> vector<8x256xf32>
    %c0_4 = arith.constant 0 : index
    %c0_5 = arith.constant 0 : index
    %4 = vector.load %arg4[%c0_4, %c0_5] : memref<8x1xf32, #tpu.memory_space<vmem>>, vector<8x1xf32>
    %5 = vector.broadcast %4 : vector<8x1xf32> to vector<8x256xf32>
    %6 = arith.addf %3, %5 : vector<8x256xf32>
    %c0_6 = arith.constant 0 : index
    %c0_7 = arith.constant 0 : index
    %c0_8 = arith.constant 0 : index
    %7 = vector.load %arg5[%c0_6, %c0_7, %c0_8] : memref<1x8x256xf32, #tpu.memory_space<vmem>>, vector<1x8x256xf32>
    %8 = vector.shape_cast %7 : vector<1x8x256xf32> to vector<8x256xf32>
    %9 = vector.shape_cast %6 : vector<8x256xf32> to vector<1x8x256xf32>
    tpu.vector_store %arg5[%c0_6, %c0_7, %c0_8], %9 {strides = array<i32>} : memref<1x8x256xf32, #tpu.memory_space<vmem>>, vector<1x8x256xf32>,
    return
  }
  func.func @transform_0(%arg0: i32, %arg1: i32) -> (i32, i32, i32) {
    %c0_i32 = arith.constant 0 : i32
    %c0_i32_0 = arith.constant 0 : i32
    return %arg0, %c0_i32, %arg1 : i32, i32, i32
  }
  func.func @transform_1(%arg0: i32, %arg1: i32) -> (i32, i32) {
    %c0_i32 = arith.constant 0 : i32
    %c0_i32_0 = arith.constant 0 : i32
    %c0_i32_1 = arith.constant 0 : i32
    return %c0_i32, %c0_i32_0 : i32, i32
  }
  func.func @transform_2(%arg0: i32, %arg1: i32) -> (i32, i32) {
    %c0_i32 = arith.constant 0 : i32
    %c0_i32_0 = arith.constant 0 : i32
    %c0_i32_1 = arith.constant 0 : i32
    return %c0_i32, %c0_i32_0 : i32, i32
  }
  func.func @transform_3(%arg0: i32, %arg1: i32) -> (i32, i32, i32) {
    %c0_i32 = arith.constant 0 : i32
    %c0_i32_0 = arith.constant 0 : i32
    return %arg0, %c0_i32, %arg1 : i32, i32, i32
  }
}

</mosaic_0001>

<llo_original>
// kernel: tpu_custom_call.1
$region0: #{tpu_custom_call.1}
  #allocation0 [shape = 'u32[]', space=smem, size = 0x4, offset = 0x4, fixed_abs, tag = 'smem constant byte address 0x4 - core index']
  #allocation1 [shape = 'u32[144,128]{1,0:T(1,128)}', space=vmem, size = 0x12000, scoped, tag = 'internal scratch']
  %s0 = inlined_call_operand.hbm [shape: f32[2,512,256], index: 0, kind: input, shape index: {}]
  %s1 = inlined_call_operand.hbm [shape: f32[8,512], index: 1, kind: input, shape index: {}]
  %s2 = inlined_call_operand.vmem [shape: f32[8,1], index: 2, kind: input, shape index: {}]
  %s3 = inlined_call_operand.hbm [shape: f32[2,8,256], index: 3, kind: output, shape index: {}]
  %s4 = sld [smem:[#allocation0]]
  $region53: #{tpu_custom_call.1} parent=0
    _
  %s6 = ssub.s32 1, %s4
  %s7 = scalar_select 0, %s6, %s4
  $region1: #{tpu_custom_call.1} parent=0
    #allocation2 [shape = 'u8[1048576]{0}', space=vmem, size = 0x100000, scoped, tag = 'input window, operand 0']
    #allocation3 [shape = 's32[2]{0}', space=sflag, size = 0x8, scoped, tag = 'scoped memory for tpu_custom_call.1']
    #allocation4 [shape = 's32[2]{0}', space=sflag, size = 0x8, scoped, tag = 'scoped memory for tpu_custom_call.1']
    #allocation5 [shape = 'u8[16384]{0}', space=vmem, size = 0x4000, scoped, tag = 'input window, operand 1, single buffered']
    #allocation6 [shape = 's32[1]{0}', space=sflag, size = 0x4, scoped, tag = 'scoped memory for tpu_custom_call.1']
    #allocation7 [shape = 'u8[16384]{0}', space=vmem, size = 0x4000, scoped, tag = 'output window, operand 0']
    %8 = vsyncpa [#allocation3], 0
    %s9 = scalar_lea.sflag [#allocation3], 1
    %10 = vsyncpa %s9, 0
    %11 = vsyncpa [#allocation6], 0
    %12 = vsyncpa [#allocation4], 0
    %s13 = scalar_lea.sflag [#allocation4], 1
    %14 = vsyncpa %s13, 0
    loop: start=0, step=1, limit=4
    $region2: #{tpu_custom_call.1} parent=1 // loop_pre_header
      _
    $region3: #{tpu_custom_call.1} parent=1 // loop_header
      %s16 = sphi 0, %s20
      %p17 = scmp.ge.s32.totalorder %s16, 4
      %s23 = sphi 0, %s35
      %s24 = sphi 0, %s31
      %s25 = sphi 0, %s23
      %s26 = sphi 0, %s24
      %s27 = sphi 0, %s25
      %s28 = sphi 0, %s26
      %s40 = sphi 0, %s42
      %s43 = sphi 0, %s40
      %s44 = sphi 0, %s43
      %s60 = sphi 0, %s44
      %s64 = sphi 0, %s64
      %s66 = sphi 0, %s64
      %s67 = sphi 0, %s66
      %s81 = sphi 0, %s67
      %s85 = sphi 0, %s85
      %s87 = sphi 0, %s85
      %s88 = sphi 0, %s87
      %s102 = sphi 0, %s88
      %s110 = sphi 0, %s112
      %s113 = sphi 0, %s110
      %s114 = sphi 0, %s113
      %s130 = sphi 0, %s114
    $region4: #{tpu_custom_call.1} parent=1 // loop_header_branch
      %19 = sbr.rel (%p17) target = $region8
    $region5: #{tpu_custom_call.1} parent=1 // loop_body
      %s21 = ssub.s32 %s16, 1
      %s22 = ssub.s32 %s16, 2
      %s29 = sadd.s32 1, %s24
      %p30 = scmp.ge.s32.totalorder %s29, 1
      %s31 = scalar_select %p30, 0, %s29
      %s32 = sadd.s32 1, %s23
      %s33 = scalar_select %p30, %s32, %s23
      %p34 = scmp.ge.s32.totalorder %s33, 2
      %s35 = scalar_select %p34, 0, %s33
      %s36 = ssub.s32 %s23, %s35
      %s37 = ssub.s32 %s24, %s31
      %s38 = sor.u32 %s36, %s37
      %p39 = scmp.eq.s32.totalorder %s38, 0
      %s41 = sadd.s32 %s40, 1
      %s42 = scalar_select %p39, %s40, %s41
      %p45 = pneg %p39
      %p46 = scmp.eq.s32.totalorder %s16, 1
      %p47 = por %p45, %p46
      %p48 = scmp.ne.s32.totalorder %s40, %s43
      %p49 = scmp.eq.s32.totalorder %s16, 0
      %p50 = por %p48, %p49
      %p51 = scmp.ne.s32.totalorder %s40, %s43
      %p52 = scmp.eq.s32.totalorder %s21, 1
      %p53 = por %p51, %p52
      %p54 = scmp.ne.s32.totalorder %s43, %s44
      %p55 = scmp.eq.s32.totalorder %s21, 0
      %p56 = por %p54, %p55
      %p57 = scmp.ne.s32.totalorder %s43, %s44
      %p58 = scmp.eq.s32.totalorder %s22, 1
      %p59 = por %p57, %p58
      %p61 = scmp.ne.s32.totalorder %s44, %s60
      %p62 = scmp.eq.s32.totalorder %s22, 0
      %p63 = por %p61, %p62
      %s65 = sadd.s32 %s64, 1
      %p68 = scmp.eq.s32.totalorder %s16, 1
      %p69 = scmp.ne.s32.totalorder %s64, %s66
      %p70 = scmp.eq.s32.totalorder %s16, 0
      %p71 = por %p69, %p70
      %p72 = scmp.ne.s32.totalorder %s64, %s66
      %p73 = scmp.eq.s32.totalorder %s21, 1
      %p74 = por %p72, %p73
      %p75 = scmp.ne.s32.totalorder %s66, %s67
      %p76 = scmp.eq.s32.totalorder %s21, 0
      %p77 = por %p75, %p76
      %p78 = scmp.ne.s32.totalorder %s66, %s67
      %p79 = scmp.eq.s32.totalorder %s22, 1
      %p80 = por %p78, %p79
      %p82 = scmp.ne.s32.totalorder %s67, %s81
      %p83 = scmp.eq.s32.totalorder %s22, 0
      %p84 = por %p82, %p83
      %s86 = sadd.s32 %s85, 1
      %p89 = scmp.eq.s32.totalorder %s16, 1
      %p90 = scmp.ne.s32.totalorder %s85, %s87
      %p91 = scmp.eq.s32.totalorder %s16, 0
      %p92 = por %p90, %p91
      %p93 = scmp.ne.s32.totalorder %s85, %s87
      %p94 = scmp.eq.s32.totalorder %s21, 1
      %p95 = por %p93, %p94
      %p96 = scmp.ne.s32.totalorder %s87, %s88
      %p97 = scmp.eq.s32.totalorder %s21, 0
      %p98 = por %p96, %p97
      %p99 = scmp.ne.s32.totalorder %s87, %s88
      %p100 = scmp.eq.s32.totalorder %s22, 1
      %p101 = por %p99, %p100
      %p103 = scmp.ne.s32.totalorder %s88, %s102
      %p104 = scmp.eq.s32.totalorder %s22, 0
      %p105 = por %p103, %p104
      %s106 = ssub.s32 %s23, %s35
      %s107 = ssub.s32 %s24, %s31
      %s108 = sor.u32 %s106, %s107
      %p109 = scmp.eq.s32.totalorder %s108, 0
      %s111 = sadd.s32 %s110, 1
      %s112 = scalar_select %p109, %s110, %s111
      %p115 = pneg %p109
      %p116 = scmp.eq.s32.totalorder %s16, 1
      %p117 = por %p115, %p116
      %p118 = scmp.ne.s32.totalorder %s110, %s113
      %p119 = scmp.eq.s32.totalorder %s16, 0
      %p120 = por %p118, %p119
      %p121 = scmp.ne.s32.totalorder %s110, %s113
      %p122 = scmp.eq.s32.totalorder %s21, 1
      %p123 = por %p121, %p122
      %p124 = scmp.ne.s32.totalorder %s113, %s114
      %p125 = scmp.eq.s32.totalorder %s21, 0
      %p126 = por %p124, %p125
      %p127 = scmp.ne.s32.totalorder %s113, %s114
      %p128 = scmp.eq.s32.totalorder %s22, 1
      %p129 = por %p127, %p128
      %p131 = scmp.ne.s32.totalorder %s114, %s130
      %p132 = scmp.eq.s32.totalorder %s22, 0
      %p133 = por %p131, %p132
      %p134 = scmp.le.s32.totalorder 1, %s16
      %p135 = scmp.lt.s32.totalorder %s16, 3
      %p136 = pnand %p134, %p135
      %p137 = pneg %p136
      // Predicated region
      $region9: #{tpu_custom_call.1} parent=5 // pred_check
        _
      $region10: #{tpu_custom_call.1} parent=5 // pred_check_branch
        %139 = sbr.rel (%p136) target = $region12
      $region11: #{tpu_custom_call.1} parent=5 // pred_region
        %s140 = ssub.s32 %s16, 1
        // Predicated region
        $region13: #{tpu_custom_call.1} parent=11 // pred_check
          %p141 = pneg %p77
        $region14: #{tpu_custom_call.1} parent=11 // pred_check_branch
          %143 = sbr.rel (%p141) target = $region16
        $region15: #{tpu_custom_call.1} parent=11 // pred_region
          %s145 = ssub.s32 512, 512
          %146 = vsyncadd [#allocation6], %s145
          %s148 = sshll.u32 [#allocation5], 4
          %s149 = int_to_ptr.vmem [resolvable:$true] %s148
          %151 = dma.hbm_to_vmem [thread:$0]  %s1, 512, %s149, [#allocation6]
        $region16: #{tpu_custom_call.1} parent=11 // pred_fallthru
          _
        // Predicated region
        $region17: #{tpu_custom_call.1} parent=11 // pred_check
          %p152 = pneg %p98
        $region18: #{tpu_custom_call.1} parent=11 // pred_check_branch
          %154 = sbr.rel (%p152) target = $region20
        $region19: #{tpu_custom_call.1} parent=11 // pred_region
          _
        $region20: #{tpu_custom_call.1} parent=11 // pred_fallthru
          _
      $region12: #{tpu_custom_call.1} parent=5 // pred_fallthru
        _
      %p155 = scmp.lt.s32.totalorder %s16, 2
      // Predicated region
      $region21: #{tpu_custom_call.1} parent=5 // pred_check
        %p156 = pneg %p155
      $region22: #{tpu_custom_call.1} parent=5 // pred_check_branch
        %158 = sbr.rel (%p156) target = $region24
      $region23: #{tpu_custom_call.1} parent=5 // pred_region
        // Predicated region
        $region25: #{tpu_custom_call.1} parent=23 // pred_check
          %p159 = pneg %p50
        $region26: #{tpu_custom_call.1} parent=23 // pred_check_branch
          %161 = sbr.rel (%p159) target = $region28
        $region27: #{tpu_custom_call.1} parent=23 // pred_region
          %s162 = sand.u32 %s40, 1
          %s163 = scalar_lea.sflag [#allocation3], %s162
          %s164 = sand.u32 %s40, 1
          %s165 = smul.addr %s164, 1024
          %s166 = scalar_lea.vmem [#allocation2], %s165
          %s167 = smul.u32 2, %s24
          %s169 = ssub.s32 16384, 16384
          %170 = vsyncadd %s163, %s169
          %s171 = smul.addr %s23, 128
          %s172 = sadd.s32 %s167, %s171
          %s173 = smul.addr %s172, 128
          %s174 = scalar_lea.hbm %s0, %s173
          %s175 = sshll.u32 %s166, 4
          %s176 = int_to_ptr.vmem [resolvable:$true] %s175
          %181 = dma.hbm_to_vmem [thread:$0]  %s174, 16384, %s176, %s163, 256, 256, 16
        $region28: #{tpu_custom_call.1} parent=23 // pred_fallthru
          _
      $region24: #{tpu_custom_call.1} parent=5 // pred_fallthru
        _
      %p182 = scmp.le.s32.totalorder 1, %s16
      %p183 = scmp.lt.s32.totalorder %s16, 3
      %p184 = pnand %p182, %p183
      %p185 = pneg %p184
      // Predicated region
      $region29: #{tpu_custom_call.1} parent=5 // pred_check
        _
      $region30: #{tpu_custom_call.1} parent=5 // pred_check_branch
        %187 = sbr.rel (%p184) target = $region32
      $region31: #{tpu_custom_call.1} parent=5 // pred_region
        %s188 = ssub.s32 %s16, 1
        %s189 = sand.u32 %s43, 1
        %s190 = scalar_lea.sflag [#allocation3], %s189
        %s191 = sand.u32 %s43, 1
        %s192 = smul.addr %s191, 1024
        %s193 = scalar_lea.vmem [#allocation2], %s192
        // Predicated region
        $region33: #{tpu_custom_call.1} parent=31 // pred_check
          %p194 = pneg %p56
        $region34: #{tpu_custom_call.1} parent=31 // pred_check_branch
          %196 = sbr.rel (%p194) target = $region36
        $region35: #{tpu_custom_call.1} parent=31 // pred_region
          %197 = dma.done %s190, 16384
        $region36: #{tpu_custom_call.1} parent=31 // pred_fallthru
          _
        // Predicated region
        $region37: #{tpu_custom_call.1} parent=31 // pred_check
          %p198 = pneg %p77
        $region38: #{tpu_custom_call.1} parent=31 // pred_check_branch
          %200 = sbr.rel (%p198) target = $region40
        $region39: #{tpu_custom_call.1} parent=31 // pred_region
          %201 = dma.done [#allocation6], 512
        $region40: #{tpu_custom_call.1} parent=31 // pred_fallthru
          _
        %s202 = sand.u32 %s43, 1
        %s203 = scalar_lea.sflag [#allocation3], %s202
        %s204 = sand.u32 %s43, 1
        %s205 = smul.addr %s204, 1024
        %s206 = scalar_lea.vmem [#allocation2], %s205
        %p207 = pneg %p56
        %p208 = pneg %p53
        %p209 = pneg %p77
        %p210 = pneg %p74
        %p211 = pneg %p98
        %p212 = pneg %p95
        %p213 = pneg %p126
        %p214 = pneg %p123
        %s215 = sand.u32 %s113, 1
        %s216 = scalar_lea.sflag [#allocation4], %s215
        %s217 = sand.u32 %s113, 1
        %s218 = smul.addr %s217, 16
        %s219 = scalar_lea.vmem [#allocation7], %s218
        %s220 = smul.u32 2, %s26
        %s221 = smul.u32 2, %s26
        %v222 = vld [vmem:[#allocation5] sm:$0xff]
        %v223 = vld [vmem:[#allocation5 + $0x8] sm:$0xff]
        %v224 = vld [vmem:[#allocation5 + $0x10] sm:$0xff]
        %v225 = vld [vmem:[#allocation5 + $0x18] sm:$0xff]
        %v226 = vld [vmem:[%s193] sm:$0xff]
        %v227 = vld [vmem:[%s193 + $0x8] sm:$0xff]
        %v228 = vld [vmem:[%s193 + $0x10] sm:$0xff]
        %v229 = vld [vmem:[%s193 + $0x18] sm:$0xff]
        %v230 = vld [vmem:[%s193 + $0x20] sm:$0xff]
        %v231 = vld [vmem:[%s193 + $0x28] sm:$0xff]
        %v232 = vld [vmem:[%s193 + $0x30] sm:$0xff]
        %v233 = vld [vmem:[%s193 + $0x38] sm:$0xff]
        %v234 = vld [vmem:[%s193 + $0x40] sm:$0xff]
        %v235 = vld [vmem:[%s193 + $0x48] sm:$0xff]
        %v236 = vld [vmem:[%s193 + $0x50] sm:$0xff]
        %v237 = vld [vmem:[%s193 + $0x58] sm:$0xff]
        %v238 = vld [vmem:[%s193 + $0x60] sm:$0xff]
        %v239 = vld [vmem:[%s193 + $0x68] sm:$0xff]
        %v240 = vld [vmem:[%s193 + $0x70] sm:$0xff]
        %v241 = vld [vmem:[%s193 + $0x78] sm:$0xff]
        %v242 = vld [vmem:[%s193 + $0x80] sm:$0xff]
        %v243 = vld [vmem:[%s193 + $0x88] sm:$0xff]
        %v244 = vld [vmem:[%s193 + $0x90] sm:$0xff]
        %v245 = vld [vmem:[%s193 + $0x98] sm:$0xff]
        %v246 = vld [vmem:[%s193 + $0xa0] sm:$0xff]
        %v247 = vld [vmem:[%s193 + $0xa8] sm:$0xff]
        %v248 = vld [vmem:[%s193 + $0xb0] sm:$0xff]
        %v249 = vld [vmem:[%s193 + $0xb8] sm:$0xff]
        %v250 = vld [vmem:[%s193 + $0xc0] sm:$0xff]
        %v251 = vld [vmem:[%s193 + $0xc8] sm:$0xff]
        %v252 = vld [vmem:[%s193 + $0xd0] sm:$0xff]
        %v253 = vld [vmem:[%s193 + $0xd8] sm:$0xff]
        %v254 = vld [vmem:[%s193 + $0xe0] sm:$0xff]
        %v255 = vld [vmem:[%s193 + $0xe8] sm:$0xff]
        %v256 = vld [vmem:[%s193 + $0xf0] sm:$0xff]
        %v257 = vld [vmem:[%s193 + $0xf8] sm:$0xff]
        %v258 = vld [vmem:[%s193 + $0x100] sm:$0xff]
        %v259 = vld [vmem:[%s193 + $0x108] sm:$0xff]
        %v260 = vld [vmem:[%s193 + $0x110] sm:$0xff]
        %v261 = vld [vmem:[%s193 + $0x118] sm:$0xff]
        %v262 = vld [vmem:[%s193 + $0x120] sm:$0xff]
        %v263 = vld [vmem:[%s193 + $0x128] sm:$0xff]
        %v264 = vld [vmem:[%s193 + $0x130] sm:$0xff]
        %v265 = vld [vmem:[%s193 + $0x138] sm:$0xff]
        %v266 = vld [vmem:[%s193 + $0x140] sm:$0xff]
        %v267 = vld [vmem:[%s193 + $0x148] sm:$0xff]
        %v268 = vld [vmem:[%s193 + $0x150] sm:$0xff]
        %v269 = vld [vmem:[%s193 + $0x158] sm:$0xff]
        %v270 = vld [vmem:[%s193 + $0x160] sm:$0xff]
        %v271 = vld [vmem:[%s193 + $0x168] sm:$0xff]
        %v272 = vld [vmem:[%s193 + $0x170] sm:$0xff]
        %v273 = vld [vmem:[%s193 + $0x178] sm:$0xff]
        %v274 = vld [vmem:[%s193 + $0x180] sm:$0xff]
        %v275 = vld [vmem:[%s193 + $0x188] sm:$0xff]
        %v276 = vld [vmem:[%s193 + $0x190] sm:$0xff]
        %v277 = vld [vmem:[%s193 + $0x198] sm:$0xff]
        %v278 = vld [vmem:[%s193 + $0x1a0] sm:$0xff]
        %v279 = vld [vmem:[%s193 + $0x1a8] sm:$0xff]
        %v280 = vld [vmem:[%s193 + $0x1b0] sm:$0xff]
        %v281 = vld [vmem:[%s193 + $0x1b8] sm:$0xff]
        %v282 = vld [vmem:[%s193 + $0x1c0] sm:$0xff]
        %v283 = vld [vmem:[%s193 + $0x1c8] sm:$0xff]
        %v284 = vld [vmem:[%s193 + $0x1d0] sm:$0xff]
        %v285 = vld [vmem:[%s193 + $0x1d8] sm:$0xff]
        %v286 = vld [vmem:[%s193 + $0x1e0] sm:$0xff]
        %v287 = vld [vmem:[%s193 + $0x1e8] sm:$0xff]
        %v288 = vld [vmem:[%s193 + $0x1f0] sm:$0xff]
        %v289 = vld [vmem:[%s193 + $0x1f8] sm:$0xff]
        %v290 = vld [vmem:[%s193 + $0x200] sm:$0xff]
        %v291 = vld [vmem:[%s193 + $0x208] sm:$0xff]
        %v292 = vld [vmem:[%s193 + $0x210] sm:$0xff]
        %v293 = vld [vmem:[%s193 + $0x218] sm:$0xff]
        %v294 = vld [vmem:[%s193 + $0x220] sm:$0xff]
        %v295 = vld [vmem:[%s193 + $0x228] sm:$0xff]
        %v296 = vld [vmem:[%s193 + $0x230] sm:$0xff]
        %v297 = vld [vmem:[%s193 + $0x238] sm:$0xff]
        %v298 = vld [vmem:[%s193 + $0x240] sm:$0xff]
        %v299 = vld [vmem:[%s193 + $0x248] sm:$0xff]
        %v300 = vld [vmem:[%s193 + $0x250] sm:$0xff]
        %v301 = vld [vmem:[%s193 + $0x258] sm:$0xff]
        %v302 = vld [vmem:[%s193 + $0x260] sm:$0xff]
        %v303 = vld [vmem:[%s193 + $0x268] sm:$0xff]
        %v304 = vld [vmem:[%s193 + $0x270] sm:$0xff]
        %v305 = vld [vmem:[%s193 + $0x278] sm:$0xff]
        %v306 = vld [vmem:[%s193 + $0x280] sm:$0xff]
        %v307 = vld [vmem:[%s193 + $0x288] sm:$0xff]
        %v308 = vld [vmem:[%s193 + $0x290] sm:$0xff]
        %v309 = vld [vmem:[%s193 + $0x298] sm:$0xff]
        %v310 = vld [vmem:[%s193 + $0x2a0] sm:$0xff]
        %v311 = vld [vmem:[%s193 + $0x2a8] sm:$0xff]
        %v312 = vld [vmem:[%s193 + $0x2b0] sm:$0xff]
        %v313 = vld [vmem:[%s193 + $0x2b8] sm:$0xff]
        %v314 = vld [vmem:[%s193 + $0x2c0] sm:$0xff]
        %v315 = vld [vmem:[%s193 + $0x2c8] sm:$0xff]
        %v316 = vld [vmem:[%s193 + $0x2d0] sm:$0xff]
        %v317 = vld [vmem:[%s193 + $0x2d8] sm:$0xff]
        %v318 = vld [vmem:[%s193 + $0x2e0] sm:$0xff]
        %v319 = vld [vmem:[%s193 + $0x2e8] sm:$0xff]
        %v320 = vld [vmem:[%s193 + $0x2f0] sm:$0xff]
        %v321 = vld [vmem:[%s193 + $0x2f8] sm:$0xff]
        %v322 = vld [vmem:[%s193 + $0x300] sm:$0xff]
        %v323 = vld [vmem:[%s193 + $0x308] sm:$0xff]
        %v324 = vld [vmem:[%s193 + $0x310] sm:$0xff]
        %v325 = vld [vmem:[%s193 + $0x318] sm:$0xff]
        %v326 = vld [vmem:[%s193 + $0x320] sm:$0xff]
        %v327 = vld [vmem:[%s193 + $0x328] sm:$0xff]
        %v328 = vld [vmem:[%s193 + $0x330] sm:$0xff]
        %v329 = vld [vmem:[%s193 + $0x338] sm:$0xff]
        %v330 = vld [vmem:[%s193 + $0x340] sm:$0xff]
        %v331 = vld [vmem:[%s193 + $0x348] sm:$0xff]
        %v332 = vld [vmem:[%s193 + $0x350] sm:$0xff]
        %v333 = vld [vmem:[%s193 + $0x358] sm:$0xff]
        %v334 = vld [vmem:[%s193 + $0x360] sm:$0xff]
        %v335 = vld [vmem:[%s193 + $0x368] sm:$0xff]
        %v336 = vld [vmem:[%s193 + $0x370] sm:$0xff]
        %v337 = vld [vmem:[%s193 + $0x378] sm:$0xff]
        %v338 = vld [vmem:[%s193 + $0x380] sm:$0xff]
        %v339 = vld [vmem:[%s193 + $0x388] sm:$0xff]
        %v340 = vld [vmem:[%s193 + $0x390] sm:$0xff]
        %v341 = vld [vmem:[%s193 + $0x398] sm:$0xff]
        %v342 = vld [vmem:[%s193 + $0x3a0] sm:$0xff]
        %v343 = vld [vmem:[%s193 + $0x3a8] sm:$0xff]
        %v344 = vld [vmem:[%s193 + $0x3b0] sm:$0xff]
        %v345 = vld [vmem:[%s193 + $0x3b8] sm:$0xff]
        %v346 = vld [vmem:[%s193 + $0x3c0] sm:$0xff]
        %v347 = vld [vmem:[%s193 + $0x3c8] sm:$0xff]
        %v348 = vld [vmem:[%s193 + $0x3d0] sm:$0xff]
        %v349 = vld [vmem:[%s193 + $0x3d8] sm:$0xff]
        %v350 = vld [vmem:[%s193 + $0x3e0] sm:$0xff]
        %v351 = vld [vmem:[%s193 + $0x3e8] sm:$0xff]
        %v352 = vld [vmem:[%s193 + $0x3f0] sm:$0xff]
        %v353 = vld [vmem:[%s193 + $0x3f8] sm:$0xff]
        %v354 = vld [vmem:[%s2] sm:$0xff]
        %356 = vset.pattern.permute.xlu0 0
        %357 = vperm.xlu0 %356, %v354
        %v358 = vpop.permute.xlu0 %357
        %360 = vmatprep.subr.mxu0 %v257
        %361 = vmatpush1.msra.mxu0 %v256
        %362 = vmatprep.subr.mxu0 %v255
        %363 = vmatpush1.msra.mxu0 %v254
        %364 = vmatprep.subr.mxu0 %v253
        %365 = vmatpush1.msra.mxu0 %v252
        %366 = vmatprep.subr.mxu0 %v251
        %367 = vmatpush1.msra.mxu0 %v250
        %368 = vmatprep.subr.mxu0 %v249
        %369 = vmatpush1.msra.mxu0 %v248
        %370 = vmatprep.subr.mxu0 %v247
        %371 = vmatpush1.msra.mxu0 %v246
        %372 = vmatprep.subr.mxu0 %v245
        %373 = vmatpush1.msra.mxu0 %v244
        %374 = vmatprep.subr.mxu0 %v243
        %375 = vmatpush1.msra.mxu0 %v242
        %376 = vmatprep.subr.mxu0 %v241
        %377 = vmatpush1.msra.mxu0 %v240
        %378 = vmatprep.subr.mxu0 %v239
        %379 = vmatpush1.msra.mxu0 %v238
        %380 = vmatprep.subr.mxu0 %v237
        %381 = vmatpush1.msra.mxu0 %v236
        %382 = vmatprep.subr.mxu0 %v235
        %383 = vmatpush1.msra.mxu0 %v234
        %384 = vmatprep.subr.mxu0 %v233
        %385 = vmatpush1.msra.mxu0 %v232
        %386 = vmatprep.subr.mxu0 %v231
        %387 = vmatpush1.msra.mxu0 %v230
        %388 = vmatprep.subr.mxu0 %v229
        %389 = vmatpush1.msra.mxu0 %v228
        %390 = vmatprep.subr.mxu0 %v227
        %391 = vmatpush1.msra.mxu0 %v226
        %392 = vmatprep.subr.mxu0 %v289
        %393 = vmatpush2.msra.mxu0 %v288
        %394 = vmatprep.subr.mxu0 %v287
        %395 = vmatpush2.msra.mxu0 %v286
        %396 = vmatprep.subr.mxu0 %v285
        %397 = vmatpush2.msra.mxu0 %v284
        %398 = vmatprep.subr.mxu0 %v283
        %399 = vmatpush2.msra.mxu0 %v282
        %400 = vmatprep.subr.mxu0 %v281
        %401 = vmatpush2.msra.mxu0 %v280
        %402 = vmatprep.subr.mxu0 %v279
        %403 = vmatpush2.msra.mxu0 %v278
        %404 = vmatprep.subr.mxu0 %v277
        %405 = vmatpush2.msra.mxu0 %v276
        %406 = vmatprep.subr.mxu0 %v275
        %407 = vmatpush2.msra.mxu0 %v274
        %408 = vmatprep.subr.mxu0 %v273
        %409 = vmatpush2.msra.mxu0 %v272
        %410 = vmatprep.subr.mxu0 %v271
        %411 = vmatpush2.msra.mxu0 %v270
        %412 = vmatprep.subr.mxu0 %v269
        %413 = vmatpush2.msra.mxu0 %v268
        %414 = vmatprep.subr.mxu0 %v267
        %415 = vmatpush2.msra.mxu0 %v266
        %416 = vmatprep.subr.mxu0 %v265
        %417 = vmatpush2.msra.mxu0 %v264
        %418 = vmatprep.subr.mxu0 %v263
        %419 = vmatpush2.msra.mxu0 %v262
        %420 = vmatprep.subr.mxu0 %v261
        %421 = vmatpush2.msra.mxu0 %v260
        %422 = vmatprep.subr.mxu0 %v259
        %423 = vmatpush2.msra.mxu0 %v258
        %424 = vmatprep.mubr.f32.mxu0 %v223
        %425 = vmatmul.mubr.f32.gmra.mxu0 %v222
        %v426 = vpop.f32.mrf.mxu0
        %v427 = vadd.f32 %v358, %v426
        %v428 = vpop.f32.mrf.mxu0
        %v429 = vadd.f32 %v358, %v428
        %430 = vdwg.mxu0
        %431 = vmatprep.subr.mxu0 %v321
        %432 = vmatpush1.msra.mxu0 %v320
        %433 = vmatprep.subr.mxu0 %v319
        %434 = vmatpush1.msra.mxu0 %v318
        %435 = vmatprep.subr.mxu0 %v317
        %436 = vmatpush1.msra.mxu0 %v316
        %437 = vmatprep.subr.mxu0 %v315
        %438 = vmatpush1.msra.mxu0 %v314
        %439 = vmatprep.subr.mxu0 %v313
        %440 = vmatpush1.msra.mxu0 %v312
        %441 = vmatprep.subr.mxu0 %v311
        %442 = vmatpush1.msra.mxu0 %v310
        %443 = vmatprep.subr.mxu0 %v309
        %444 = vmatpush1.msra.mxu0 %v308
        %445 = vmatprep.subr.mxu0 %v307
        %446 = vmatpush1.msra.mxu0 %v306
        %447 = vmatprep.subr.mxu0 %v305
        %448 = vmatpush1.msra.mxu0 %v304
        %449 = vmatprep.subr.mxu0 %v303
        %450 = vmatpush1.msra.mxu0 %v302
        %451 = vmatprep.subr.mxu0 %v301
        %452 = vmatpush1.msra.mxu0 %v300
        %453 = vmatprep.subr.mxu0 %v299
        %454 = vmatpush1.msra.mxu0 %v298
        %455 = vmatprep.subr.mxu0 %v297
        %456 = vmatpush1.msra.mxu0 %v296
        %457 = vmatprep.subr.mxu0 %v295
        %458 = vmatpush1.msra.mxu0 %v294
        %459 = vmatprep.subr.mxu0 %v293
        %460 = vmatpush1.msra.mxu0 %v292
        %461 = vmatprep.subr.mxu0 %v291
        %462 = vmatpush1.msra.mxu0 %v290
        %463 = vmatprep.subr.mxu0 %v353
        %464 = vmatpush2.msra.mxu0 %v352
        %465 = vmatprep.subr.mxu0 %v351
        %466 = vmatpush2.msra.mxu0 %v350
        %467 = vmatprep.subr.mxu0 %v349
        %468 = vmatpush2.msra.mxu0 %v348
        %469 = vmatprep.subr.mxu0 %v347
        %470 = vmatpush2.msra.mxu0 %v346
        %471 = vmatprep.subr.mxu0 %v345
        %472 = vmatpush2.msra.mxu0 %v344
        %473 = vmatprep.subr.mxu0 %v343
        %474 = vmatpush2.msra.mxu0 %v342
        %475 = vmatprep.subr.mxu0 %v341
        %476 = vmatpush2.msra.mxu0 %v340
        %477 = vmatprep.subr.mxu0 %v339
        %478 = vmatpush2.msra.mxu0 %v338
        %479 = vmatprep.subr.mxu0 %v337
        %480 = vmatpush2.msra.mxu0 %v336
        %481 = vmatprep.subr.mxu0 %v335
        %482 = vmatpush2.msra.mxu0 %v334
        %483 = vmatprep.subr.mxu0 %v333
        %484 = vmatpush2.msra.mxu0 %v332
        %485 = vmatprep.subr.mxu0 %v331
        %486 = vmatpush2.msra.mxu0 %v330
        %487 = vmatprep.subr.mxu0 %v329
        %488 = vmatpush2.msra.mxu0 %v328
        %489 = vmatprep.subr.mxu0 %v327
        %490 = vmatpush2.msra.mxu0 %v326
        %491 = vmatprep.subr.mxu0 %v325
        %492 = vmatpush2.msra.mxu0 %v324
        %493 = vmatprep.subr.mxu0 %v323
        %494 = vmatpush2.msra.mxu0 %v322
        %495 = vmatprep.mubr.f32.mxu0 %v225
        %496 = vmatmul.mubr.f32.gmra.mxu0 %v224
        %v497 = vpop.f32.mrf.mxu0
        %v498 = vadd.f32 %v427, %v497
        %v499 = vpop.f32.mrf.mxu0
        %v500 = vadd.f32 %v429, %v499
        %501 = vdwg.mxu0
        %502 = vst [vmem:[%s219] sm:$0xff] %v498
        %503 = vst [vmem:[%s219 + $0x8] sm:$0xff] %v500
        %s504 = sand.u32 %s113, 1
        %s505 = scalar_lea.sflag [#allocation4], %s504
        %s506 = sand.u32 %s113, 1
        %s507 = smul.addr %s506, 16
        %s508 = scalar_lea.vmem [#allocation7], %s507
        // Predicated region
        $region41: #{tpu_custom_call.1} parent=31 // pred_check
          %p509 = pneg %p123
        $region42: #{tpu_custom_call.1} parent=31 // pred_check_branch
          %511 = sbr.rel (%p509) target = $region44
        $region43: #{tpu_custom_call.1} parent=31 // pred_region
          %s512 = smul.u32 2, %s26
          %s514 = ssub.s32 256, 256
          %515 = vsyncadd %s505, %s514
          %s516 = smul.addr %s25, 2
          %s517 = sadd.s32 %s512, %s516
          %s518 = smul.addr %s517, 128
          %s519 = scalar_lea.hbm %s3, %s518
          %s521 = sshll.u32 %s508, 4
          %s522 = int_to_ptr.vmem [resolvable:$true] %s521
          %524 = dma.vmem_to_hbm [thread:$0]  %s522, 256, %s519, %s505
        $region44: #{tpu_custom_call.1} parent=31 // pred_fallthru
          _
      $region32: #{tpu_custom_call.1} parent=5 // pred_fallthru
        _
      %p525 = scmp.le.s32.totalorder 2, %s16
      // Predicated region
      $region45: #{tpu_custom_call.1} parent=5 // pred_check
        %p526 = pneg %p525
      $region46: #{tpu_custom_call.1} parent=5 // pred_check_branch
        %528 = sbr.rel (%p526) target = $region48
      $region47: #{tpu_custom_call.1} parent=5 // pred_region
        %s529 = ssub.s32 %s16, 2
        // Predicated region
        $region49: #{tpu_custom_call.1} parent=47 // pred_check
          %p530 = pneg %p129
        $region50: #{tpu_custom_call.1} parent=47 // pred_check_branch
          %532 = sbr.rel (%p530) target = $region52
        $region51: #{tpu_custom_call.1} parent=47 // pred_region
          %s533 = sand.u32 %s114, 1
          %s534 = scalar_lea.sflag [#allocation4], %s533
          %s535 = sand.u32 %s114, 1
          %s536 = smul.addr %s535, 16
          %s537 = scalar_lea.vmem [#allocation7], %s536
          %538 = dma.done %s534, 256
        $region52: #{tpu_custom_call.1} parent=47 // pred_fallthru
          _
      $region48: #{tpu_custom_call.1} parent=5 // pred_fallthru
        _
    $region6: #{tpu_custom_call.1} parent=1 // loop_footer
      %s20 = sadd.s32 1, %s16
    $region7: #{tpu_custom_call.1} parent=1 // loop_footer_branch
      %15 = sbr.rel target = $region3
    $region8: #{tpu_custom_call.1} parent=1 // loop_exit
      _
    %539 = vsyncpa [#allocation3], 1
    %s540 = scalar_lea.sflag [#allocation3], 1
    %541 = vsyncpa %s540, 1
    %542 = vsyncpa [#allocation6], 1
    %543 = vsyncpa [#allocation4], 1
    %s544 = scalar_lea.sflag [#allocation4], 1
    %545 = vsyncpa %s544, 1

</llo_original>
